<compile_context>
chip_gen: v6e
topology: v6e:2x2x1
jax: 0.10.0
libtpu: 0.0.40
codegen_flags: <defaults>
</compile_context>

<pallas_src>
import functools

import jax
import jax.numpy as jnp
from jax.experimental import pallas as pl
from jax.experimental.pallas import tpu as pltpu

LEAKY_SLOPE = 0.01   # nn.LeakyReLU() default
LN_EPS = 1e-5        # nn.LayerNorm default
LANE = 128
SUBLANE = 8


def _round_up(x, m):
    return ((x + m - 1) // m) * m


def _leaky_relu(x):
    # mul + max (2 VALU ops) instead of cmp + select (mask vreg).
    return jnp.maximum(x, LEAKY_SLOPE * x)


def event_type_kernel(tok_ref,            # [BR, 2H]   token rows (compute dtype, pipelined)
                      stats_ref,          # SMEM (2,)  f32: [sum(e), sum(e*e)]
                      w1t_ref,            # [2H, FH]   gamma-folded token part of w1 (cd)
                      consts_ref,         # [8, FH]    rows: c1, s1, b1', b2, 0, 0, 0, 0 (f32)
                      w2_ref,             # [FH, FH]   (cd)
                      wft_ref,            # [Rp8, FH]  wf transposed, role-padded (cd)
                      bft_ref,            # [Rp8, 1]   bf transposed (f32)
                      out_ref,            # [Rp8, BR]  transposed logits (f32)
                      *, in_dim, compute_dtype):
    tok = tok_ref[...]                                             # [BR, 2H] (cd)
    tok32 = tok.astype(jnp.float32)
    s_e = stats_ref[0]                                             # sum(etype)
    q_e = stats_ref[1]                                             # sum(etype**2)

    # --- one-pass LayerNorm stats over the (virtual) concatenated [tok | etype] row ---
    inv_d = 1.0 / in_dim
    row_sum = jnp.sum(tok32, axis=-1, keepdims=True) + s_e         # [BR, 1]
    row_sq = jnp.sum(tok32 * tok32, axis=-1, keepdims=True) + q_e  # [BR, 1]
    mean = row_sum * inv_d
    var = row_sq * inv_d - mean * mean
    r = jax.lax.rsqrt(var + LN_EPS)                                # [BR, 1]

    cst = consts_ref[...]                                          # [8, FH] f32
    c1, s1, b1, b2 = cst[0:1], cst[1:2], cst[2:3], cst[3:4]

    # --- first Linear with LN affine folded in ---
    #   h1 = r * (tok @ W1g_tok + c1 - mean * colsum(W1g)) + (beta @ w1 + b1)
    t = jnp.dot(tok, w1t_ref[...], preferred_element_type=jnp.float32)   # [BR, FH] f32
    h = r * (t + c1 - mean * s1) + b1
    h = _leaky_relu(h)

    # --- second Linear + LeakyReLU (f32 elementwise, cd MXU inputs) ---
    h = jnp.dot(h.astype(compute_dtype), w2_ref[...],
                preferred_element_type=jnp.float32) + b2
    h = _leaky_relu(h)

    # --- final Linear, computed directly transposed: [Rp8, BR] = wf_t . h^T ---
    logit_t = jax.lax.dot_general(
        wft_ref[...], h.astype(compute_dtype),
        dimension_numbers=(((1,), (1,)), ((), ())),
        preferred_element_type=jnp.float32)                        # [Rp8, BR]
    out_ref[...] = (logit_t + bft_ref[...]).astype(out_ref.dtype)  # lane-dense vst


def event_type_forward(token_feature, event_type_features, params, *,
                       compute_dtype=jnp.bfloat16, max_block_rows=1024):
    """Forward pass equivalent to Event_Type.forward (dropout is a no-op there)."""
    n, two_h = token_feature.shape
    e = event_type_features.astype(jnp.float32)                    # [1, E]
    e_dim = e.shape[1]
    in_dim = two_h + e_dim

    gamma, beta = params["gamma"], params["beta"]                  # [1, in_dim]
    w1, b1 = params["w1"], params["b1"]                            # [in_dim, FH]
    w2, b2 = params["w2"], params["b2"]                            # [FH, FH]
    wf, bf = params["wf"], params["bf"]                            # [FH, R]
    fh = w1.shape[1]
    role_nums = wf.shape[1]

    # ---- one-time exact parameter folding (outside the kernel) ----
    w1g = w1 * jnp.transpose(gamma)                                # row-scale by gamma
    b1f = beta @ w1 + b1                                           # [1, FH]
    w1g_tok = w1g[:two_h]                                          # [2H, FH]
    c1 = e @ w1g[two_h:]                                           # [1, FH] etype row contrib
    s1 = jnp.sum(w1g, axis=0, keepdims=True)                       # [1, FH] == gamma @ w1
    stats = jnp.stack([jnp.sum(e), jnp.sum(e * e)]).astype(jnp.float32)  # (2,) -> SMEM

    # merge the per-column constants into one aligned [8, FH] tile (one DMA, not four)
    consts = jnp.concatenate(
        [c1, s1, b1f, b2, jnp.zeros((4, fh), jnp.float32)], axis=0)      # [8, FH]

    # ---- transposed final layer: logits stored [role_pad8, rows] (lane-dense) ----
    r_pad = _round_up(role_nums, SUBLANE)
    wf_t = jnp.pad(wf, ((0, 0), (0, r_pad - role_nums))).T         # [Rp8, FH]
    bf_t = jnp.pad(bf, ((0, 0), (0, r_pad - role_nums))).T         # [Rp8, 1]

    # ---- row tiling: 128-aligned rows (lane dim of the transposed output);
    #      aim for >= 2 grid steps so megacore / v7x's second TC gets work ----
    half = _round_up(max((n + 1) // 2, 1), LANE)
    br = max(LANE, min(max_block_rows, half))
    n_pad = _round_up(n, br)

    cd = compute_dtype
    tok_p = jnp.pad(token_feature.astype(jnp.float32),
                    ((0, n_pad - n), (0, 0))).astype(cd)           # bf16 DMA when cd=bf16
    w1t_c = w1g_tok.astype(cd)
    w2_c = w2.astype(cd)
    wft_c = wf_t.astype(cd)

    def pinned(shape):
        # weights / constants: resident in VMEM across all row tiles
        return pl.BlockSpec(shape, lambda i: (0, 0))

    kernel = functools.partial(event_type_kernel, in_dim=in_dim, compute_dtype=cd)

    out = pl.pallas_call(
        kernel,
        out_shape=jax.ShapeDtypeStruct((r_pad, n_pad), jnp.float32),
        grid=(n_pad // br,),
        in_specs=[
            pl.BlockSpec((br, two_h), lambda i: (i, 0)),                 # token rows
            pl.BlockSpec(memory_space=pltpu.MemorySpace.SMEM),           # [S_e, Q_e]
            pinned((two_h, fh)),                                         # W1g_tok
            pinned((8, fh)),                                             # consts
            pinned((fh, fh)),                                            # w2
            pinned((r_pad, fh)),                                         # wf^T (padded)
            pinned((r_pad, 1)),                                          # bf^T (padded)
        ],
        out_specs=pl.BlockSpec((r_pad, br), lambda i: (0, i)),
        compiler_params=pltpu.CompilerParams(
            dimension_semantics=("parallel",),          # megacore / v7x dual-TC sharding
            vmem_limit_bytes=32 * 1024 * 1024,          # sized for v7x (64 MiB physical)
        ),
    )(tok_p, stats, w1t_c, consts, w2_c, wft_c, bf_t)

    # tiny [role, N] slice + transpose (replaces re-reading a padded [N, 128] slab)
    return out[:role_nums, :n].T


def make_params(key, in_dim, final_hidden, role_nums):
    ks = jax.random.split(key, 5)

    def lin(k, fan_in, fan_out):
        bound = 1.0 / (fan_in ** 0.5)
        kw, kb = jax.random.split(k)
        w = jax.random.uniform(kw, (fan_in, fan_out), jnp.float32, -bound, bound)
        b = jax.random.uniform(kb, (1, fan_out), jnp.float32, -bound, bound)
        return w, b

    w1, b1 = lin(ks[0], in_dim, final_hidden)
    w2, b2 = lin(ks[1], final_hidden, final_hidden)
    wf, bf = lin(ks[2], final_hidden, role_nums)
    # Non-trivial gamma/beta so the LN-affine fold is actually exercised.
    gamma = jax.random.uniform(ks[3], (1, in_dim), jnp.float32, 0.5, 1.5)
    beta = jax.random.uniform(ks[4], (1, in_dim), jnp.float32, -0.5, 0.5)
    return dict(gamma=gamma, beta=beta, w1=w1, b1=b1, w2=w2, b2=b2, wf=wf, bf=bf)


def reference_forward(token_feature, event_type_features, params):
    """Straightforward JAX port of the PyTorch module (no folding)."""
    n = token_feature.shape[0]
    e = jnp.broadcast_to(event_type_features, (n, event_type_features.shape[1]))
    x = jnp.concatenate([token_feature, e], axis=1)
    mean = jnp.mean(x, axis=-1, keepdims=True)
    var = jnp.mean((x - mean) ** 2, axis=-1, keepdims=True)
    xn = (x - mean) / jnp.sqrt(var + LN_EPS) * params["gamma"] + params["beta"]
    h = _leaky_relu(xn @ params["w1"] + params["b1"])
    h = _leaky_relu(h @ params["w2"] + params["b2"])
    return h @ params["wf"] + params["bf"]


if __name__ == "__main__":
    # args: hidden_size=32, event_type_embedding_dim=64, final_hidden_size=128,
    #       num_mlps=2 (dropout unused in forward); role_nums=8; N=8 tokens.
    hidden_size = 32
    event_emb = 64
    final_hidden = 128
    role_nums = 8
    num_tokens = 8
    in_dim = 2 * hidden_size + event_emb

    key = jax.random.PRNGKey(0)
    k_tok, k_ev, k_par = jax.random.split(key, 3)

    token_feature = jax.random.normal(k_tok, (num_tokens, 2 * hidden_size), jnp.float32)
    event_type_features = jax.random.normal(k_ev, (1, event_emb), jnp.float32)
    params = make_params(k_par, in_dim, final_hidden, role_nums)

    ref = reference_forward(token_feature, event_type_features, params)

    # Exact f32 MXU path — strict tolerance (validates the LN-affine fold + transpose).
    logits_f32 = event_type_forward(token_feature, event_type_features, params,
                                    compute_dtype=jnp.float32)
    logits_f32 = jax.block_until_ready(logits_f32)
    assert logits_f32.shape == (num_tokens, role_nums)
    assert jnp.allclose(logits_f32, ref, atol=1e-4, rtol=1e-4)

    # Default path: bf16 MXU inputs + bf16 token DMA (v5e/v6e/v7x) — loose tolerance.
    logits = event_type_forward(token_feature, event_type_features, params)
    logits = jax.block_until_ready(logits)
    assert logits.shape == (num_tokens, role_nums)
    assert jnp.allclose(logits, ref, atol=1e-1, rtol=1e-1)

    print("KERNEL_OK")
</pallas_src>

<mosaic_0001>
module attributes {stable_mosaic.version = 11 : i64} {
  func.func @event_type_kernel(%arg0: i32, %arg1: memref<128x64xf32, #tpu.memory_space<vmem>>, %arg2: memref<2xf32, #tpu.memory_space<smem>>, %arg3: memref<64x128xf32, #tpu.memory_space<vmem>>, %arg4: memref<8x128xf32, #tpu.memory_space<vmem>>, %arg5: memref<128x128xf32, #tpu.memory_space<vmem>>, %arg6: memref<8x128xf32, #tpu.memory_space<vmem>>, %arg7: memref<8x1xf32, #tpu.memory_space<vmem>>, %arg8: memref<8x128xf32, #tpu.memory_space<vmem>>) attributes {dimension_semantics = [#tpu.dimension_semantics<parallel>], iteration_bounds = array<i64: 1>, scalar_prefetch = 0 : i64, scratch_operands = 0 : i64, tpu.core_type = #tpu.core_type<tc>, window_params = [{transform_indices = @transform_0, window_bounds = array<i64: 128, 64>}, {transform_indices = @transform_1, window_bounds = array<i64: 2>}, {pipeline_mode = #tpu.pipeline_mode<synchronous>, transform_indices = @transform_2, window_bounds = array<i64: 64, 128>}, {pipeline_mode = #tpu.pipeline_mode<synchronous>, transform_indices = @transform_3, window_bounds = array<i64: 8, 128>}, {pipeline_mode = #tpu.pipeline_mode<synchronous>, transform_indices = @transform_4, window_bounds = array<i64: 128, 128>}, {pipeline_mode = #tpu.pipeline_mode<synchronous>, transform_indices = @transform_5, window_bounds = array<i64: 8, 128>}, {pipeline_mode = #tpu.pipeline_mode<synchronous>, transform_indices = @transform_6, window_bounds = array<i64: 8, 1>}, {transform_indices = @transform_7, window_bounds = array<i64: 8, 128>}]} {
    %c0 = arith.constant 0 : index
    %c0_0 = arith.constant 0 : index
    %0 = vector.load %arg1[%c0, %c0_0] : memref<128x64xf32, #tpu.memory_space<vmem>>, vector<128x64xf32>
    %c0_1 = arith.constant 0 : index
    %1 = memref.load %arg2[%c0_1] : memref<2xf32, #tpu.memory_space<smem>>
    %c1 = arith.constant 1 : index
    %2 = memref.load %arg2[%c1] : memref<2xf32, #tpu.memory_space<smem>>
    %cst = arith.constant dense<0.000000e+00> : vector<128xf32>
    %3 = vector.multi_reduction <add>, %0, %cst [1] : vector<128x64xf32> to vector<128xf32>
    %4 = vector.shape_cast %3 : vector<128xf32> to vector<128x1xf32>
    %5 = vector.broadcast %1 : f32 to vector<128x1xf32>
    %6 = arith.addf %4, %5 : vector<128x1xf32>
    %7 = arith.mulf %0, %0 : vector<128x64xf32>
    %cst_2 = arith.constant dense<0.000000e+00> : vector<128xf32>
    %8 = vector.multi_reduction <add>, %7, %cst_2 [1] : vector<128x64xf32> to vector<128xf32>
    %9 = vector.shape_cast %8 : vector<128xf32> to vector<128x1xf32>
    %10 = vector.broadcast %2 : f32 to vector<128x1xf32>
    %11 = arith.addf %9, %10 : vector<128x1xf32>
    %cst_3 = arith.constant 7.812500e-03 : f32
    %12 = vector.broadcast %cst_3 : f32 to vector<128x1xf32>
    %13 = arith.mulf %6, %12 : vector<128x1xf32>
    %cst_4 = arith.constant 7.812500e-03 : f32
    %14 = vector.broadcast %cst_4 : f32 to vector<128x1xf32>
    %15 = arith.mulf %11, %14 : vector<128x1xf32>
    %16 = arith.mulf %13, %13 : vector<128x1xf32>
    %17 = arith.subf %15, %16 : vector<128x1xf32>
    %cst_5 = arith.constant 9.99999974E-6 : f32
    %18 = vector.broadcast %cst_5 : f32 to vector<128x1xf32>
    %19 = arith.addf %17, %18 : vector<128x1xf32>
    %20 = math.rsqrt %19 : vector<128x1xf32>
    %c0_6 = arith.constant 0 : index
    %c0_7 = arith.constant 0 : index
    %21 = vector.load %arg4[%c0_6, %c0_7] : memref<8x128xf32, #tpu.memory_space<vmem>>, vector<8x128xf32>
    %22 = vector.extract_strided_slice %21 {offsets = [0, 0], sizes = [1, 128], strides = [1, 1]} : vector<8x128xf32> to vector<1x128xf32>
    %23 = vector.extract_strided_slice %21 {offsets = [1, 0], sizes = [1, 128], strides = [1, 1]} : vector<8x128xf32> to vector<1x128xf32>
    %24 = vector.extract_strided_slice %21 {offsets = [2, 0], sizes = [1, 128], strides = [1, 1]} : vector<8x128xf32> to vector<1x128xf32>
    %25 = vector.extract_strided_slice %21 {offsets = [3, 0], sizes = [1, 128], strides = [1, 1]} : vector<8x128xf32> to vector<1x128xf32>
    %c0_8 = arith.constant 0 : index
    %c0_9 = arith.constant 0 : index
    %26 = vector.load %arg3[%c0_8, %c0_9] : memref<64x128xf32, #tpu.memory_space<vmem>>, vector<64x128xf32>
    %cst_10 = arith.constant dense<0.000000e+00> : vector<128x128xf32>
    %27 = tpu.matmul %0, %26, %cst_10 {dimension_numbers = #tpu.dot_dimension_numbers<[1], [0], [0], [1], [0, 0, 1, 1], [], []>} : vector<128x64xf32>, vector<64x128xf32>, vector<128x128xf32> -> vector<128x128xf32>
    %28 = vector.broadcast %22 : vector<1x128xf32> to vector<128x128xf32>
    %29 = arith.addf %27, %28 : vector<128x128xf32>
    %30 = vector.broadcast %13 : vector<128x1xf32> to vector<128x128xf32>
    %31 = vector.broadcast %23 : vector<1x128xf32> to vector<128x128xf32>
    %32 = arith.mulf %30, %31 : vector<128x128xf32>
    %33 = arith.subf %29, %32 : vector<128x128xf32>
    %34 = vector.broadcast %20 : vector<128x1xf32> to vector<128x128xf32>
    %35 = arith.mulf %34, %33 : vector<128x128xf32>
    %36 = vector.broadcast %24 : vector<1x128xf32> to vector<128x128xf32>
    %37 = arith.addf %35, %36 : vector<128x128xf32>
    %cst_11 = arith.constant 0.00999999977 : f32
    %38 = vector.broadcast %cst_11 : f32 to vector<128x128xf32>
    %39 = arith.mulf %38, %37 : vector<128x128xf32>
    %40 = arith.maximumf %37, %39 : vector<128x128xf32>
    %c0_12 = arith.constant 0 : index
    %c0_13 = arith.constant 0 : index
    %41 = vector.load %arg5[%c0_12, %c0_13] : memref<128x128xf32, #tpu.memory_space<vmem>>, vector<128x128xf32>
    %cst_14 = arith.constant dense<0.000000e+00> : vector<128x128xf32>
    %42 = tpu.matmul %40, %41, %cst_14 {dimension_numbers = #tpu.dot_dimension_numbers<[1], [0], [0], [1], [0, 0, 1, 1], [], []>} : vector<128x128xf32>, vector<128x128xf32>, vector<128x128xf32> -> vector<128x128xf32>
    %43 = vector.broadcast %25 : vector<1x128xf32> to vector<128x128xf32>
    %44 = arith.addf %42, %43 : vector<128x128xf32>
    %cst_15 = arith.constant 0.00999999977 : f32
    %45 = vector.broadcast %cst_15 : f32 to vector<128x128xf32>
    %46 = arith.mulf %45, %44 : vector<128x128xf32>
    %47 = arith.maximumf %44, %46 : vector<128x128xf32>
    %c0_16 = arith.constant 0 : index
    %c0_17 = arith.constant 0 : index
    %48 = vector.load %arg6[%c0_16, %c0_17] : memref<8x128xf32, #tpu.memory_space<vmem>>, vector<8x128xf32>
    %cst_18 = arith.constant dense<0.000000e+00> : vector<8x128xf32>
    %49 = tpu.matmul %48, %47, %cst_18 {dimension_numbers = #tpu.dot_dimension_numbers<[1], [1], [0], [0], [0, 0, 1, 0], [], []>} : vector<8x128xf32>, vector<128x128xf32>, vector<8x128xf32> -> vector<8x128xf32>
    %c0_19 = arith.constant 0 : index
    %c0_20 = arith.constant 0 : index
    %50 = vector.load %arg7[%c0_19, %c0_20] : memref<8x1xf32, #tpu.memory_space<vmem>>, vector<8x1xf32>
    %51 = vector.broadcast %50 : vector<8x1xf32> to vector<8x128xf32>
    %52 = arith.addf %49, %51 : vector<8x128xf32>
    %c0_21 = arith.constant 0 : index
    %c0_22 = arith.constant 0 : index
    %53 = vector.load %arg8[%c0_21, %c0_22] : memref<8x128xf32, #tpu.memory_space<vmem>>, vector<8x128xf32>
    tpu.vector_store %arg8[%c0_21, %c0_22], %52 {strides = array<i32>} : memref<8x128xf32, #tpu.memory_space<vmem>>, vector<8x128xf32>,
    return
  }
  func.func @transform_0(%arg0: i32) -> (i32, i32) {
    %c0_i32 = arith.constant 0 : i32
    %c0_i32_0 = arith.constant 0 : i32
    return %arg0, %c0_i32 : i32, i32
  }
  func.func @transform_1(%arg0: i32) -> i32 {
    %c0_i32 = arith.constant 0 : i32
    %c0_i32_0 = arith.constant 0 : i32
    return %c0_i32 : i32
  }
  func.func @transform_2(%arg0: i32) -> (i32, i32) {
    %c0_i32 = arith.constant 0 : i32
    %c0_i32_0 = arith.constant 0 : i32
    %c0_i32_1 = arith.constant 0 : i32
    return %c0_i32, %c0_i32_0 : i32, i32
  }
  func.func @transform_3(%arg0: i32) -> (i32, i32) {
    %c0_i32 = arith.constant 0 : i32
    %c0_i32_0 = arith.constant 0 : i32
    %c0_i32_1 = arith.constant 0 : i32
    return %c0_i32, %c0_i32_0 : i32, i32
  }
  func.func @transform_4(%arg0: i32) -> (i32, i32) {
    %c0_i32 = arith.constant 0 : i32
    %c0_i32_0 = arith.constant 0 : i32
    %c0_i32_1 = arith.constant 0 : i32
    return %c0_i32, %c0_i32_0 : i32, i32
  }
  func.func @transform_5(%arg0: i32) -> (i32, i32) {
    %c0_i32 = arith.constant 0 : i32
    %c0_i32_0 = arith.constant 0 : i32
    %c0_i32_1 = arith.constant 0 : i32
    return %c0_i32, %c0_i32_0 : i32, i32
  }
  func.func @transform_6(%arg0: i32) -> (i32, i32) {
    %c0_i32 = arith.constant 0 : i32
    %c0_i32_0 = arith.constant 0 : i32
    %c0_i32_1 = arith.constant 0 : i32
    return %c0_i32, %c0_i32_0 : i32, i32
  }
  func.func @transform_7(%arg0: i32) -> (i32, i32) {
    %c0_i32 = arith.constant 0 : i32
    %c0_i32_0 = arith.constant 0 : i32
    return %c0_i32, %arg0 : i32, i32
  }
}

</mosaic_0001>

<llo_original>
// kernel: tpu_custom_call.1
$region0: #{tpu_custom_call.1}
  #allocation0 [shape = 'u32[]', space=smem, size = 0x4, offset = 0x4, fixed_abs, tag = 'smem constant byte address 0x4 - core index']
  #allocation1 [shape = 'u32[144,128]{1,0:T(1,128)}', space=vmem, size = 0x12000, scoped, tag = 'internal scratch']
  %s0 = inlined_call_operand.vmem [shape: f32[128,64], index: 0, kind: input, shape index: {}]
  %s1 = inlined_call_operand.hbm [shape: f32[2], index: 1, kind: input, shape index: {}]
  %s2 = inlined_call_operand.vmem [shape: f32[64,128], index: 2, kind: input, shape index: {}]
  %s3 = inlined_call_operand.vmem [shape: f32[8,128], index: 3, kind: input, shape index: {}]
  %s4 = inlined_call_operand.vmem [shape: f32[128,128], index: 4, kind: input, shape index: {}]
  %s5 = inlined_call_operand.vmem [shape: f32[8,128], index: 5, kind: input, shape index: {}]
  %s6 = inlined_call_operand.vmem [shape: f32[8,1], index: 6, kind: input, shape index: {}]
  %s7 = inlined_call_operand.hbm [shape: f32[8,128], index: 7, kind: output, shape index: {}]
  %s8 = sld [smem:[#allocation0]]
  $region42: #{tpu_custom_call.1} parent=0
    _
  %s10 = ssub.s32 1, %s8
  %s11 = scalar_select 0, %s10, %s8
  $region1: #{tpu_custom_call.1} parent=0
    #allocation2 [shape = 'u8[512]{0}', space=smem, size = 0x200, scoped, tag = 'input window, operand 1, single buffered']
    #allocation3 [shape = 's32[1]{0}', space=sflag, size = 0x4, scoped, tag = 'scoped memory for tpu_custom_call.1']
    #allocation4 [shape = 's32[1]{0}', space=sflag, size = 0x4, scoped, tag = 'scoped memory for tpu_custom_call.1']
    #allocation5 [shape = 'u8[4096]{0}', space=vmem, size = 0x1000, scoped, tag = 'output window, operand 0, single buffered']
    %12 = vsyncpa [#allocation4], 0
    %13 = vsyncpa [#allocation3], 0
    // Predicated region
    $region2: #{tpu_custom_call.1} parent=1 // pred_check
      _
    $region3: #{tpu_custom_call.1} parent=1 // pred_check_branch
      %15 = sbr.rel (0) target = $region5
    $region4: #{tpu_custom_call.1} parent=1 // pred_region
      _
    $region5: #{tpu_custom_call.1} parent=1 // pred_fallthru
      _
    // Predicated region
    $region6: #{tpu_custom_call.1} parent=1 // pred_check
      _
    $region7: #{tpu_custom_call.1} parent=1 // pred_check_branch
      %17 = sbr.rel (0) target = $region9
    $region8: #{tpu_custom_call.1} parent=1 // pred_region
      %s19 = ssub.s32 16, 16
      %20 = vsyncadd [#allocation4], %s19
      %23 = dma.hbm_to_smem %s1, 16, [#allocation2], [#allocation4]
    $region9: #{tpu_custom_call.1} parent=1 // pred_fallthru
      _
    // Predicated region
    $region10: #{tpu_custom_call.1} parent=1 // pred_check
      _
    $region11: #{tpu_custom_call.1} parent=1 // pred_check_branch
      %25 = sbr.rel (0) target = $region13
    $region12: #{tpu_custom_call.1} parent=1 // pred_region
      _
    $region13: #{tpu_custom_call.1} parent=1 // pred_fallthru
      _
    // Predicated region
    $region14: #{tpu_custom_call.1} parent=1 // pred_check
      _
    $region15: #{tpu_custom_call.1} parent=1 // pred_check_branch
      %27 = sbr.rel (0) target = $region17
    $region16: #{tpu_custom_call.1} parent=1 // pred_region
      _
    $region17: #{tpu_custom_call.1} parent=1 // pred_fallthru
      _
    // Predicated region
    $region18: #{tpu_custom_call.1} parent=1 // pred_check
      _
    $region19: #{tpu_custom_call.1} parent=1 // pred_check_branch
      %29 = sbr.rel (0) target = $region21
    $region20: #{tpu_custom_call.1} parent=1 // pred_region
      _
    $region21: #{tpu_custom_call.1} parent=1 // pred_fallthru
      _
    // Predicated region
    $region22: #{tpu_custom_call.1} parent=1 // pred_check
      _
    $region23: #{tpu_custom_call.1} parent=1 // pred_check_branch
      %31 = sbr.rel (0) target = $region25
    $region24: #{tpu_custom_call.1} parent=1 // pred_region
      _
    $region25: #{tpu_custom_call.1} parent=1 // pred_fallthru
      _
    // Predicated region
    $region26: #{tpu_custom_call.1} parent=1 // pred_check
      _
    $region27: #{tpu_custom_call.1} parent=1 // pred_check_branch
      %33 = sbr.rel (0) target = $region29
    $region28: #{tpu_custom_call.1} parent=1 // pred_region
      _
    $region29: #{tpu_custom_call.1} parent=1 // pred_fallthru
      _
    // Predicated region
    $region30: #{tpu_custom_call.1} parent=1 // pred_check
      _
    $region31: #{tpu_custom_call.1} parent=1 // pred_check_branch
      %35 = sbr.rel (0) target = $region33
    $region32: #{tpu_custom_call.1} parent=1 // pred_region
      %36 = dma.done [#allocation4], 16
    $region33: #{tpu_custom_call.1} parent=1 // pred_fallthru
      _
    %37 = sfence
    %v38 = vld [vmem:[%s0] sm:$0xff]
    %v39 = vld [vmem:[%s0 + $0x8] sm:$0xff]
    %v40 = vld [vmem:[%s0 + $0x10] sm:$0xff]
    %v41 = vld [vmem:[%s0 + $0x18] sm:$0xff]
    %v42 = vld [vmem:[%s0 + $0x20] sm:$0xff]
    %v43 = vld [vmem:[%s0 + $0x28] sm:$0xff]
    %v44 = vld [vmem:[%s0 + $0x30] sm:$0xff]
    %v45 = vld [vmem:[%s0 + $0x38] sm:$0xff]
    %v46 = vld [vmem:[%s0 + $0x40] sm:$0xff]
    %v47 = vld [vmem:[%s0 + $0x48] sm:$0xff]
    %v48 = vld [vmem:[%s0 + $0x50] sm:$0xff]
    %v49 = vld [vmem:[%s0 + $0x58] sm:$0xff]
    %v50 = vld [vmem:[%s0 + $0x60] sm:$0xff]
    %v51 = vld [vmem:[%s0 + $0x68] sm:$0xff]
    %v52 = vld [vmem:[%s0 + $0x70] sm:$0xff]
    %v53 = vld [vmem:[%s0 + $0x78] sm:$0xff]
    %s54 = sld [smem:[#allocation2]]
    %s55 = sld [smem:[#allocation2 + $0x1]]
    %vm56 = vcmask 523264
    %v57 = vsel %vm56, %v38, 0.0
    %58 = vadd.xlane.f32.xlu0 %v57
    %v59 = vpop.xlane.xlu0 %58
    %v60 = vsel %vm56, %v39, 0.0
    %61 = vadd.xlane.f32.xlu0 %v60
    %v62 = vpop.xlane.xlu0 %61
    %v63 = vsel %vm56, %v40, 0.0
    %64 = vadd.xlane.f32.xlu0 %v63
    %v65 = vpop.xlane.xlu0 %64
    %v66 = vsel %vm56, %v41, 0.0
    %67 = vadd.xlane.f32.xlu0 %v66
    %v68 = vpop.xlane.xlu0 %67
    %v69 = vsel %vm56, %v42, 0.0
    %70 = vadd.xlane.f32.xlu0 %v69
    %v71 = vpop.xlane.xlu0 %70
    %v72 = vsel %vm56, %v43, 0.0
    %73 = vadd.xlane.f32.xlu0 %v72
    %v74 = vpop.xlane.xlu0 %73
    %v75 = vsel %vm56, %v44, 0.0
    %76 = vadd.xlane.f32.xlu0 %v75
    %v77 = vpop.xlane.xlu0 %76
    %v78 = vsel %vm56, %v45, 0.0
    %79 = vadd.xlane.f32.xlu0 %v78
    %v80 = vpop.xlane.xlu0 %79
    %v81 = vsel %vm56, %v46, 0.0
    %82 = vadd.xlane.f32.xlu0 %v81
    %v83 = vpop.xlane.xlu0 %82
    %v84 = vsel %vm56, %v47, 0.0
    %85 = vadd.xlane.f32.xlu0 %v84
    %v86 = vpop.xlane.xlu0 %85
    %v87 = vsel %vm56, %v48, 0.0
    %88 = vadd.xlane.f32.xlu0 %v87
    %v89 = vpop.xlane.xlu0 %88
    %v90 = vsel %vm56, %v49, 0.0
    %91 = vadd.xlane.f32.xlu0 %v90
    %v92 = vpop.xlane.xlu0 %91
    %v93 = vsel %vm56, %v50, 0.0
    %94 = vadd.xlane.f32.xlu0 %v93
    %v95 = vpop.xlane.xlu0 %94
    %v96 = vsel %vm56, %v51, 0.0
    %97 = vadd.xlane.f32.xlu0 %v96
    %v98 = vpop.xlane.xlu0 %97
    %v99 = vsel %vm56, %v52, 0.0
    %100 = vadd.xlane.f32.xlu0 %v99
    %v101 = vpop.xlane.xlu0 %100
    %v102 = vsel %vm56, %v53, 0.0
    %103 = vadd.xlane.f32.xlu0 %v102
    %v104 = vpop.xlane.xlu0 %103
    %v105 = vstv %s54
    %v106 = vadd.f32 %v59, %v105
    %v107 = vadd.f32 %v62, %v105
    %v108 = vadd.f32 %v65, %v105
    %v109 = vadd.f32 %v68, %v105
    %v110 = vadd.f32 %v71, %v105
    %v111 = vadd.f32 %v74, %v105
    %v112 = vadd.f32 %v77, %v105
    %v113 = vadd.f32 %v80, %v105
    %v114 = vadd.f32 %v83, %v105
    %v115 = vadd.f32 %v86, %v105
    %v116 = vadd.f32 %v89, %v105
    %v117 = vadd.f32 %v92, %v105
    %v118 = vadd.f32 %v95, %v105
    %v119 = vadd.f32 %v98, %v105
    %v120 = vadd.f32 %v101, %v105
    %v121 = vadd.f32 %v104, %v105
    %v122 = vmul.f32 %v38, %v38
    %v123 = vmul.f32 %v39, %v39
    %v124 = vmul.f32 %v40, %v40
    %v125 = vmul.f32 %v41, %v41
    %v126 = vmul.f32 %v42, %v42
    %v127 = vmul.f32 %v43, %v43
    %v128 = vmul.f32 %v44, %v44
    %v129 = vmul.f32 %v45, %v45
    %v130 = vmul.f32 %v46, %v46
    %v131 = vmul.f32 %v47, %v47
    %v132 = vmul.f32 %v48, %v48
    %v133 = vmul.f32 %v49, %v49
    %v134 = vmul.f32 %v50, %v50
    %v135 = vmul.f32 %v51, %v51
    %v136 = vmul.f32 %v52, %v52
    %v137 = vmul.f32 %v53, %v53
    %v138 = vsel %vm56, %v122, 0.0
    %139 = vadd.xlane.f32.xlu0 %v138
    %v140 = vpop.xlane.xlu0 %139
    %v141 = vsel %vm56, %v123, 0.0
    %142 = vadd.xlane.f32.xlu0 %v141
    %v143 = vpop.xlane.xlu0 %142
    %v144 = vsel %vm56, %v124, 0.0
    %145 = vadd.xlane.f32.xlu0 %v144
    %v146 = vpop.xlane.xlu0 %145
    %v147 = vsel %vm56, %v125, 0.0
    %148 = vadd.xlane.f32.xlu0 %v147
    %v149 = vpop.xlane.xlu0 %148
    %v150 = vsel %vm56, %v126, 0.0
    %151 = vadd.xlane.f32.xlu0 %v150
    %v152 = vpop.xlane.xlu0 %151
    %v153 = vsel %vm56, %v127, 0.0
    %154 = vadd.xlane.f32.xlu0 %v153
    %v155 = vpop.xlane.xlu0 %154
    %v156 = vsel %vm56, %v128, 0.0
    %157 = vadd.xlane.f32.xlu0 %v156
    %v158 = vpop.xlane.xlu0 %157
    %v159 = vsel %vm56, %v129, 0.0
    %160 = vadd.xlane.f32.xlu0 %v159
    %v161 = vpop.xlane.xlu0 %160
    %v162 = vsel %vm56, %v130, 0.0
    %163 = vadd.xlane.f32.xlu0 %v162
    %v164 = vpop.xlane.xlu0 %163
    %v165 = vsel %vm56, %v131, 0.0
    %166 = vadd.xlane.f32.xlu0 %v165
    %v167 = vpop.xlane.xlu0 %166
    %v168 = vsel %vm56, %v132, 0.0
    %169 = vadd.xlane.f32.xlu0 %v168
    %v170 = vpop.xlane.xlu0 %169
    %v171 = vsel %vm56, %v133, 0.0
    %172 = vadd.xlane.f32.xlu0 %v171
    %v173 = vpop.xlane.xlu0 %172
    %v174 = vsel %vm56, %v134, 0.0
    %175 = vadd.xlane.f32.xlu0 %v174
    %v176 = vpop.xlane.xlu0 %175
    %v177 = vsel %vm56, %v135, 0.0
    %178 = vadd.xlane.f32.xlu0 %v177
    %v179 = vpop.xlane.xlu0 %178
    %v180 = vsel %vm56, %v136, 0.0
    %181 = vadd.xlane.f32.xlu0 %v180
    %v182 = vpop.xlane.xlu0 %181
    %v183 = vsel %vm56, %v137, 0.0
    %184 = vadd.xlane.f32.xlu0 %v183
    %v185 = vpop.xlane.xlu0 %184
    %v186 = vstv %s55
    %v187 = vadd.f32 %v140, %v186
    %v188 = vadd.f32 %v143, %v186
    %v189 = vadd.f32 %v146, %v186
    %v190 = vadd.f32 %v149, %v186
    %v191 = vadd.f32 %v152, %v186
    %v192 = vadd.f32 %v155, %v186
    %v193 = vadd.f32 %v158, %v186
    %v194 = vadd.f32 %v161, %v186
    %v195 = vadd.f32 %v164, %v186
    %v196 = vadd.f32 %v167, %v186
    %v197 = vadd.f32 %v170, %v186
    %v198 = vadd.f32 %v173, %v186
    %v199 = vadd.f32 %v176, %v186
    %v200 = vadd.f32 %v179, %v186
    %v201 = vadd.f32 %v182, %v186
    %v202 = vadd.f32 %v185, %v186
    %v203 = vmul.f32 %v106, 0.0078125
    %v204 = vmul.f32 %v107, 0.0078125
    %v205 = vmul.f32 %v108, 0.0078125
    %v206 = vmul.f32 %v109, 0.0078125
    %v207 = vmul.f32 %v110, 0.0078125
    %v208 = vmul.f32 %v111, 0.0078125
    %v209 = vmul.f32 %v112, 0.0078125
    %v210 = vmul.f32 %v113, 0.0078125
    %v211 = vmul.f32 %v114, 0.0078125
    %v212 = vmul.f32 %v115, 0.0078125
    %v213 = vmul.f32 %v116, 0.0078125
    %v214 = vmul.f32 %v117, 0.0078125
    %v215 = vmul.f32 %v118, 0.0078125
    %v216 = vmul.f32 %v119, 0.0078125
    %v217 = vmul.f32 %v120, 0.0078125
    %v218 = vmul.f32 %v121, 0.0078125
    %v219 = vmul.f32 %v187, 0.0078125
    %v220 = vmul.f32 %v188, 0.0078125
    %v221 = vmul.f32 %v189, 0.0078125
    %v222 = vmul.f32 %v190, 0.0078125
    %v223 = vmul.f32 %v191, 0.0078125
    %v224 = vmul.f32 %v192, 0.0078125
    %v225 = vmul.f32 %v193, 0.0078125
    %v226 = vmul.f32 %v194, 0.0078125
    %v227 = vmul.f32 %v195, 0.0078125
    %v228 = vmul.f32 %v196, 0.0078125
    %v229 = vmul.f32 %v197, 0.0078125
    %v230 = vmul.f32 %v198, 0.0078125
    %v231 = vmul.f32 %v199, 0.0078125
    %v232 = vmul.f32 %v200, 0.0078125
    %v233 = vmul.f32 %v201, 0.0078125
    %v234 = vmul.f32 %v202, 0.0078125
    %v235 = vmul.f32 %v203, %v203
    %v236 = vmul.f32 %v204, %v204
    %v237 = vmul.f32 %v205, %v205
    %v238 = vmul.f32 %v206, %v206
    %v239 = vmul.f32 %v207, %v207
    %v240 = vmul.f32 %v208, %v208
    %v241 = vmul.f32 %v209, %v209
    %v242 = vmul.f32 %v210, %v210
    %v243 = vmul.f32 %v211, %v211
    %v244 = vmul.f32 %v212, %v212
    %v245 = vmul.f32 %v213, %v213
    %v246 = vmul.f32 %v214, %v214
    %v247 = vmul.f32 %v215, %v215
    %v248 = vmul.f32 %v216, %v216
    %v249 = vmul.f32 %v217, %v217
    %v250 = vmul.f32 %v218, %v218
    %v251 = vsub.f32 %v219, %v235
    %v252 = vsub.f32 %v220, %v236
    %v253 = vsub.f32 %v221, %v237
    %v254 = vsub.f32 %v222, %v238
    %v255 = vsub.f32 %v223, %v239
    %v256 = vsub.f32 %v224, %v240
    %v257 = vsub.f32 %v225, %v241
    %v258 = vsub.f32 %v226, %v242
    %v259 = vsub.f32 %v227, %v243
    %v260 = vsub.f32 %v228, %v244
    %v261 = vsub.f32 %v229, %v245
    %v262 = vsub.f32 %v230, %v246
    %v263 = vsub.f32 %v231, %v247
    %v264 = vsub.f32 %v232, %v248
    %v265 = vsub.f32 %v233, %v249
    %v266 = vsub.f32 %v234, %v250
    %v267 = vadd.f32 %v251, 1e-05
    %v268 = vadd.f32 %v252, 1e-05
    %v269 = vadd.f32 %v253, 1e-05
    %v270 = vadd.f32 %v254, 1e-05
    %v271 = vadd.f32 %v255, 1e-05
    %v272 = vadd.f32 %v256, 1e-05
    %v273 = vadd.f32 %v257, 1e-05
    %v274 = vadd.f32 %v258, 1e-05
    %v275 = vadd.f32 %v259, 1e-05
    %v276 = vadd.f32 %v260, 1e-05
    %v277 = vadd.f32 %v261, 1e-05
    %v278 = vadd.f32 %v262, 1e-05
    %v279 = vadd.f32 %v263, 1e-05
    %v280 = vadd.f32 %v264, 1e-05
    %v281 = vadd.f32 %v265, 1e-05
    %v282 = vadd.f32 %v266, 1e-05
    %v283 = vrsqrt.pop %v267
    %v284 = vrsqrt.pop %v268
    %v285 = vrsqrt.pop %v269
    %v286 = vrsqrt.pop %v270
    %v287 = vrsqrt.pop %v271
    %v288 = vrsqrt.pop %v272
    %v289 = vrsqrt.pop %v273
    %v290 = vrsqrt.pop %v274
    %v291 = vrsqrt.pop %v275
    %v292 = vrsqrt.pop %v276
    %v293 = vrsqrt.pop %v277
    %v294 = vrsqrt.pop %v278
    %v295 = vrsqrt.pop %v279
    %v296 = vrsqrt.pop %v280
    %v297 = vrsqrt.pop %v281
    %v298 = vrsqrt.pop %v282
    %v299 = vld [vmem:[%s3] sm:$0xff]
    %v300 = vld [vmem:[%s2] sm:$0xff]
    %v301 = vld [vmem:[%s2 + $0x8] sm:$0xff]
    %v302 = vld [vmem:[%s2 + $0x10] sm:$0xff]
    %v303 = vld [vmem:[%s2 + $0x18] sm:$0xff]
    %v304 = vld [vmem:[%s2 + $0x20] sm:$0xff]
    %v305 = vld [vmem:[%s2 + $0x28] sm:$0xff]
    %v306 = vld [vmem:[%s2 + $0x30] sm:$0xff]
    %v307 = vld [vmem:[%s2 + $0x38] sm:$0xff]
    %v308 = vlaneseq
    %v309 = vshrl.u32 %v308, 7
    %v310 = vsub.s32 0, %v309
    %v311 = vrot.slane %v299, %v310
    %v313 = vsel %vm56, %v38, 0
    %v316 = vsel %vm56, %v39, 0
    %v319 = vsel %vm56, %v40, 0
    %v322 = vsel %vm56, %v41, 0
    %v325 = vsel %vm56, %v42, 0
    %v328 = vsel %vm56, %v43, 0
    %v331 = vsel %vm56, %v44, 0
    %v334 = vsel %vm56, %v45, 0
    %v337 = vsel %vm56, %v46, 0
    %v340 = vsel %vm56, %v47, 0
    %v343 = vsel %vm56, %v48, 0
    %v346 = vsel %vm56, %v49, 0
    %v349 = vsel %vm56, %v50, 0
    %v352 = vsel %vm56, %v51, 0
    %v355 = vsel %vm56, %v52, 0
    %v358 = vsel %vm56, %v53, 0
    %360 = vmatprep.subr.mxu0 0.0
    %361 = vmatpush1.msra.mxu0 0.0
    %362 = vmatprep.subr.mxu0 0.0
    %363 = vmatpush1.msra.mxu0 0.0
    %364 = vmatprep.subr.mxu0 0.0
    %365 = vmatpush1.msra.mxu0 0.0
    %366 = vmatprep.subr.mxu0 0.0
    %367 = vmatpush1.msra.mxu0 0.0
    %368 = vmatprep.subr.mxu0 0.0
    %369 = vmatpush1.msra.mxu0 0.0
    %370 = vmatprep.subr.mxu0 0.0
    %371 = vmatpush1.msra.mxu0 0.0
    %372 = vmatprep.subr.mxu0 0.0
    %373 = vmatpush1.msra.mxu0 0.0
    %374 = vmatprep.subr.mxu0 0.0
    %375 = vmatpush1.msra.mxu0 0.0
    %376 = vmatprep.subr.mxu0 0.0
    %377 = vmatpush1.msra.mxu0 %v307
    %378 = vmatprep.subr.mxu0 0.0
    %379 = vmatpush1.msra.mxu0 %v306
    %380 = vmatprep.subr.mxu0 0.0
    %381 = vmatpush1.msra.mxu0 %v305
    %382 = vmatprep.subr.mxu0 0.0
    %383 = vmatpush1.msra.mxu0 %v304
    %384 = vmatprep.subr.mxu0 0.0
    %385 = vmatpush1.msra.mxu0 %v303
    %386 = vmatprep.subr.mxu0 0.0
    %387 = vmatpush1.msra.mxu0 %v302
    %388 = vmatprep.subr.mxu0 0.0
    %389 = vmatpush1.msra.mxu0 %v301
    %390 = vmatprep.subr.mxu0 0.0
    %391 = vmatpush1.msra.mxu0 %v300
    %392 = vmatprep.subr.mxu0 0.0
    %393 = vmatpush2.msra.mxu0 0.0
    %394 = vmatprep.subr.mxu0 0.0
    %395 = vmatpush2.msra.mxu0 0.0
    %396 = vmatprep.subr.mxu0 0.0
    %397 = vmatpush2.msra.mxu0 0.0
    %398 = vmatprep.subr.mxu0 0.0
    %399 = vmatpush2.msra.mxu0 0.0
    %400 = vmatprep.subr.mxu0 0.0
    %401 = vmatpush2.msra.mxu0 0.0
    %402 = vmatprep.subr.mxu0 0.0
    %403 = vmatpush2.msra.mxu0 0.0
    %404 = vmatprep.subr.mxu0 0.0
    %405 = vmatpush2.msra.mxu0 0.0
    %406 = vmatprep.subr.mxu0 0.0
    %407 = vmatpush2.msra.mxu0 0.0
    %408 = vmatprep.subr.mxu0 0.0
    %409 = vmatpush2.msra.mxu0 0.0
    %410 = vmatprep.subr.mxu0 0.0
    %411 = vmatpush2.msra.mxu0 0.0
    %412 = vmatprep.subr.mxu0 0.0
    %413 = vmatpush2.msra.mxu0 0.0
    %414 = vmatprep.subr.mxu0 0.0
    %415 = vmatpush2.msra.mxu0 0.0
    %416 = vmatprep.subr.mxu0 0.0
    %417 = vmatpush2.msra.mxu0 0.0
    %418 = vmatprep.subr.mxu0 0.0
    %419 = vmatpush2.msra.mxu0 0.0
    %420 = vmatprep.subr.mxu0 0.0
    %421 = vmatpush2.msra.mxu0 0.0
    %422 = vmatprep.subr.mxu0 0.0
    %423 = vmatpush2.msra.mxu0 0.0
    %424 = vmatprep.mubr.f32.mxu0 0.0
    %425 = vmatmul.mubr.f32.gmra.mxu0 %v313
    %v426 = vpop.f32.mrf.mxu0
    %v427 = vadd.f32 %v311, %v426
    %v428 = vpop.f32.mrf.mxu0
    %429 = vmatprep.mubr.f32.mxu0 0.0
    %430 = vmatmul.mubr.f32.gmra.mxu0 %v316
    %v431 = vpop.f32.mrf.mxu0
    %v432 = vadd.f32 %v311, %v431
    %v433 = vpop.f32.mrf.mxu0
    %434 = vmatprep.mubr.f32.mxu0 0.0
    %435 = vmatmul.mubr.f32.gmra.mxu0 %v319
    %v436 = vpop.f32.mrf.mxu0
    %v437 = vadd.f32 %v311, %v436
    %v438 = vpop.f32.mrf.mxu0
    %439 = vmatprep.mubr.f32.mxu0 0.0
    %440 = vmatmul.mubr.f32.gmra.mxu0 %v322
    %v441 = vpop.f32.mrf.mxu0
    %v442 = vadd.f32 %v311, %v441
    %v443 = vpop.f32.mrf.mxu0
    %444 = vmatprep.mubr.f32.mxu0 0.0
    %445 = vmatmul.mubr.f32.gmra.mxu0 %v325
    %v446 = vpop.f32.mrf.mxu0
    %v447 = vadd.f32 %v311, %v446
    %v448 = vpop.f32.mrf.mxu0
    %449 = vmatprep.mubr.f32.mxu0 0.0
    %450 = vmatmul.mubr.f32.gmra.mxu0 %v328
    %v451 = vpop.f32.mrf.mxu0
    %v452 = vadd.f32 %v311, %v451
    %v453 = vpop.f32.mrf.mxu0
    %454 = vmatprep.mubr.f32.mxu0 0.0
    %455 = vmatmul.mubr.f32.gmra.mxu0 %v331
    %v456 = vpop.f32.mrf.mxu0
    %v457 = vadd.f32 %v311, %v456
    %v458 = vpop.f32.mrf.mxu0
    %459 = vmatprep.mubr.f32.mxu0 0.0
    %460 = vmatmul.mubr.f32.gmra.mxu0 %v334
    %v461 = vpop.f32.mrf.mxu0
    %v462 = vadd.f32 %v311, %v461
    %v463 = vpop.f32.mrf.mxu0
    %464 = vmatprep.mubr.f32.mxu0 0.0
    %465 = vmatmul.mubr.f32.gmra.mxu0 %v337
    %v466 = vpop.f32.mrf.mxu0
    %v467 = vadd.f32 %v311, %v466
    %v468 = vpop.f32.mrf.mxu0
    %469 = vmatprep.mubr.f32.mxu0 0.0
    %470 = vmatmul.mubr.f32.gmra.mxu0 %v340
    %v471 = vpop.f32.mrf.mxu0
    %v472 = vadd.f32 %v311, %v471
    %v473 = vpop.f32.mrf.mxu0
    %474 = vmatprep.mubr.f32.mxu0 0.0
    %475 = vmatmul.mubr.f32.gmra.mxu0 %v343
    %v476 = vpop.f32.mrf.mxu0
    %v477 = vadd.f32 %v311, %v476
    %v478 = vpop.f32.mrf.mxu0
    %479 = vmatprep.mubr.f32.mxu0 0.0
    %480 = vmatmul.mubr.f32.gmra.mxu0 %v346
    %v481 = vpop.f32.mrf.mxu0
    %v482 = vadd.f32 %v311, %v481
    %v483 = vpop.f32.mrf.mxu0
    %484 = vmatprep.mubr.f32.mxu0 0.0
    %485 = vmatmul.mubr.f32.gmra.mxu0 %v349
    %v486 = vpop.f32.mrf.mxu0
    %v487 = vadd.f32 %v311, %v486
    %v488 = vpop.f32.mrf.mxu0
    %489 = vmatprep.mubr.f32.mxu0 0.0
    %490 = vmatmul.mubr.f32.gmra.mxu0 %v352
    %v491 = vpop.f32.mrf.mxu0
    %v492 = vadd.f32 %v311, %v491
    %v493 = vpop.f32.mrf.mxu0
    %494 = vmatprep.mubr.f32.mxu0 0.0
    %495 = vmatmul.mubr.f32.gmra.mxu0 %v355
    %v496 = vpop.f32.mrf.mxu0
    %v497 = vadd.f32 %v311, %v496
    %v498 = vpop.f32.mrf.mxu0
    %499 = vmatprep.mubr.f32.mxu0 0.0
    %500 = vmatmul.mubr.f32.gmra.mxu0 %v358
    %v501 = vpop.f32.mrf.mxu0
    %v502 = vadd.f32 %v311, %v501
    %v503 = vpop.f32.mrf.mxu0
    %504 = vdwg.mxu0
    %v505 = vlaneseq
    %v506 = vshrl.u32 %v505, 7
    %v507 = vsub.s32 1, %v506
    %v508 = vrot.slane %v299, %v507
    %v509 = vmul.f32 %v203, %v508
    %v510 = vmul.f32 %v204, %v508
    %v511 = vmul.f32 %v205, %v508
    %v512 = vmul.f32 %v206, %v508
    %v513 = vmul.f32 %v207, %v508
    %v514 = vmul.f32 %v208, %v508
    %v515 = vmul.f32 %v209, %v508
    %v516 = vmul.f32 %v210, %v508
    %v517 = vmul.f32 %v211, %v508
    %v518 = vmul.f32 %v212, %v508
    %v519 = vmul.f32 %v213, %v508
    %v520 = vmul.f32 %v214, %v508
    %v521 = vmul.f32 %v215, %v508
    %v522 = vmul.f32 %v216, %v508
    %v523 = vmul.f32 %v217, %v508
    %v524 = vmul.f32 %v218, %v508
    %v525 = vsub.f32 %v427, %v509
    %v526 = vsub.f32 %v432, %v510
    %v527 = vsub.f32 %v437, %v511
    %v528 = vsub.f32 %v442, %v512
    %v529 = vsub.f32 %v447, %v513
    %v530 = vsub.f32 %v452, %v514
    %v531 = vsub.f32 %v457, %v515
    %v532 = vsub.f32 %v462, %v516
    %v533 = vsub.f32 %v467, %v517
    %v534 = vsub.f32 %v472, %v518
    %v535 = vsub.f32 %v477, %v519
    %v536 = vsub.f32 %v482, %v520
    %v537 = vsub.f32 %v487, %v521
    %v538 = vsub.f32 %v492, %v522
    %v539 = vsub.f32 %v497, %v523
    %v540 = vsub.f32 %v502, %v524
    %v541 = vmul.f32 %v283, %v525
    %v542 = vmul.f32 %v284, %v526
    %v543 = vmul.f32 %v285, %v527
    %v544 = vmul.f32 %v286, %v528
    %v545 = vmul.f32 %v287, %v529
    %v546 = vmul.f32 %v288, %v530
    %v547 = vmul.f32 %v289, %v531
    %v548 = vmul.f32 %v290, %v532
    %v549 = vmul.f32 %v291, %v533
    %v550 = vmul.f32 %v292, %v534
    %v551 = vmul.f32 %v293, %v535
    %v552 = vmul.f32 %v294, %v536
    %v553 = vmul.f32 %v295, %v537
    %v554 = vmul.f32 %v296, %v538
    %v555 = vmul.f32 %v297, %v539
    %v556 = vmul.f32 %v298, %v540
    %v557 = vlaneseq
    %v558 = vshrl.u32 %v557, 7
    %v559 = vsub.s32 2, %v558
    %v560 = vrot.slane %v299, %v559
    %v561 = vadd.f32 %v541, %v560
    %v562 = vadd.f32 %v542, %v560
    %v563 = vadd.f32 %v543, %v560
    %v564 = vadd.f32 %v544, %v560
    %v565 = vadd.f32 %v545, %v560
    %v566 = vadd.f32 %v546, %v560
    %v567 = vadd.f32 %v547, %v560
    %v568 = vadd.f32 %v548, %v560
    %v569 = vadd.f32 %v549, %v560
    %v570 = vadd.f32 %v550, %v560
    %v571 = vadd.f32 %v551, %v560
    %v572 = vadd.f32 %v552, %v560
    %v573 = vadd.f32 %v553, %v560
    %v574 = vadd.f32 %v554, %v560
    %v575 = vadd.f32 %v555, %v560
    %v576 = vadd.f32 %v556, %v560
    %v577 = vmul.f32 %v561, 0.01
    %v578 = vmul.f32 %v562, 0.01
    %v579 = vmul.f32 %v563, 0.01
    %v580 = vmul.f32 %v564, 0.01
    %v581 = vmul.f32 %v565, 0.01
    %v582 = vmul.f32 %v566, 0.01
    %v583 = vmul.f32 %v567, 0.01
    %v584 = vmul.f32 %v568, 0.01
    %v585 = vmul.f32 %v569, 0.01
    %v586 = vmul.f32 %v570, 0.01
    %v587 = vmul.f32 %v571, 0.01
    %v588 = vmul.f32 %v572, 0.01
    %v589 = vmul.f32 %v573, 0.01
    %v590 = vmul.f32 %v574, 0.01
    %v591 = vmul.f32 %v575, 0.01
    %v592 = vmul.f32 %v576, 0.01
    %v593 = vmax.f32 %v561, %v577
    %v594 = vmax.f32 %v562, %v578
    %v595 = vmax.f32 %v563, %v579
    %v596 = vmax.f32 %v564, %v580
    %v597 = vmax.f32 %v565, %v581
    %v598 = vmax.f32 %v566, %v582
    %v599 = vmax.f32 %v567, %v583
    %v600 = vmax.f32 %v568, %v584
    %v601 = vmax.f32 %v569, %v585
    %v602 = vmax.f32 %v570, %v586
    %v603 = vmax.f32 %v571, %v587
    %v604 = vmax.f32 %v572, %v588
    %v605 = vmax.f32 %v573, %v589
    %v606 = vmax.f32 %v574, %v590
    %v607 = vmax.f32 %v575, %v591
    %v608 = vmax.f32 %v576, %v592
    %v609 = vld [vmem:[%s4] sm:$0xff]
    %v610 = vld [vmem:[%s4 + $0x8] sm:$0xff]
    %v611 = vld [vmem:[%s4 + $0x10] sm:$0xff]
    %v612 = vld [vmem:[%s4 + $0x18] sm:$0xff]
    %v613 = vld [vmem:[%s4 + $0x20] sm:$0xff]
    %v614 = vld [vmem:[%s4 + $0x28] sm:$0xff]
    %v615 = vld [vmem:[%s4 + $0x30] sm:$0xff]
    %v616 = vld [vmem:[%s4 + $0x38] sm:$0xff]
    %v617 = vld [vmem:[%s4 + $0x40] sm:$0xff]
    %v618 = vld [vmem:[%s4 + $0x48] sm:$0xff]
    %v619 = vld [vmem:[%s4 + $0x50] sm:$0xff]
    %v620 = vld [vmem:[%s4 + $0x58] sm:$0xff]
    %v621 = vld [vmem:[%s4 + $0x60] sm:$0xff]
    %v622 = vld [vmem:[%s4 + $0x68] sm:$0xff]
    %v623 = vld [vmem:[%s4 + $0x70] sm:$0xff]
    %v624 = vld [vmem:[%s4 + $0x78] sm:$0xff]
    %v625 = vlaneseq
    %v626 = vshrl.u32 %v625, 7
    %v627 = vsub.s32 3, %v626
    %v628 = vrot.slane %v299, %v627
    %629 = vmatprep.subr.mxu0 0.0
    %630 = vmatpush1.msra.mxu0 %v624
    %631 = vmatprep.subr.mxu0 0.0
    %632 = vmatpush1.msra.mxu0 %v623
    %633 = vmatprep.subr.mxu0 0.0
    %634 = vmatpush1.msra.mxu0 %v622
    %635 = vmatprep.subr.mxu0 0.0
    %636 = vmatpush1.msra.mxu0 %v621
    %637 = vmatprep.subr.mxu0 0.0
    %638 = vmatpush1.msra.mxu0 %v620
    %639 = vmatprep.subr.mxu0 0.0
    %640 = vmatpush1.msra.mxu0 %v619
    %641 = vmatprep.subr.mxu0 0.0
    %642 = vmatpush1.msra.mxu0 %v618
    %643 = vmatprep.subr.mxu0 0.0
    %644 = vmatpush1.msra.mxu0 %v617
    %645 = vmatprep.subr.mxu0 0.0
    %646 = vmatpush1.msra.mxu0 %v616
    %647 = vmatprep.subr.mxu0 0.0
    %648 = vmatpush1.msra.mxu0 %v615
    %649 = vmatprep.subr.mxu0 0.0
    %650 = vmatpush1.msra.mxu0 %v614
    %651 = vmatprep.subr.mxu0 0.0
    %652 = vmatpush1.msra.mxu0 %v613
    %653 = vmatprep.subr.mxu0 0.0
    %654 = vmatpush1.msra.mxu0 %v612
    %655 = vmatprep.subr.mxu0 0.0
    %656 = vmatpush1.msra.mxu0 %v611
    %657 = vmatprep.subr.mxu0 0.0
    %658 = vmatpush1.msra.mxu0 %v610
    %659 = vmatprep.subr.mxu0 0.0
    %660 = vmatpush1.msra.mxu0 %v609
    %661 = vmatprep.subr.mxu0 0.0
    %662 = vmatpush2.msra.mxu0 0.0
    %663 = vmatprep.subr.mxu0 0.0
    %664 = vmatpush2.msra.mxu0 0.0
    %665 = vmatprep.subr.mxu0 0.0
    %666 = vmatpush2.msra.mxu0 0.0
    %667 = vmatprep.subr.mxu0 0.0
    %668 = vmatpush2.msra.mxu0 0.0
    %669 = vmatprep.subr.mxu0 0.0
    %670 = vmatpush2.msra.mxu0 0.0
    %671 = vmatprep.subr.mxu0 0.0
    %672 = vmatpush2.msra.mxu0 0.0
    %673 = vmatprep.subr.mxu0 0.0
    %674 = vmatpush2.msra.mxu0 0.0
    %675 = vmatprep.subr.mxu0 0.0
    %676 = vmatpush2.msra.mxu0 0.0
    %677 = vmatprep.subr.mxu0 0.0
    %678 = vmatpush2.msra.mxu0 0.0
    %679 = vmatprep.subr.mxu0 0.0
    %680 = vmatpush2.msra.mxu0 0.0
    %681 = vmatprep.subr.mxu0 0.0
    %682 = vmatpush2.msra.mxu0 0.0
    %683 = vmatprep.subr.mxu0 0.0
    %684 = vmatpush2.msra.mxu0 0.0
    %685 = vmatprep.subr.mxu0 0.0
    %686 = vmatpush2.msra.mxu0 0.0
    %687 = vmatprep.subr.mxu0 0.0
    %688 = vmatpush2.msra.mxu0 0.0
    %689 = vmatprep.subr.mxu0 0.0
    %690 = vmatpush2.msra.mxu0 0.0
    %691 = vmatprep.subr.mxu0 0.0
    %692 = vmatpush2.msra.mxu0 0.0
    %693 = vmatprep.mubr.f32.mxu0 0.0
    %694 = vmatmul.mubr.f32.gmra.mxu0 %v593
    %v695 = vpop.f32.mrf.mxu0
    %v696 = vadd.f32 %v628, %v695
    %v697 = vpop.f32.mrf.mxu0
    %698 = vmatprep.mubr.f32.mxu0 0.0
    %699 = vmatmul.mubr.f32.gmra.mxu0 %v594
    %v700 = vpop.f32.mrf.mxu0
    %v701 = vadd.f32 %v628, %v700
    %v702 = vpop.f32.mrf.mxu0
    %703 = vmatprep.mubr.f32.mxu0 0.0
    %704 = vmatmul.mubr.f32.gmra.mxu0 %v595
    %v705 = vpop.f32.mrf.mxu0
    %v706 = vadd.f32 %v628, %v705
    %v707 = vpop.f32.mrf.mxu0
    %708 = vmatprep.mubr.f32.mxu0 0.0
    %709 = vmatmul.mubr.f32.gmra.mxu0 %v596
    %v710 = vpop.f32.mrf.mxu0
    %v711 = vadd.f32 %v628, %v710
    %v712 = vpop.f32.mrf.mxu0
    %713 = vmatprep.mubr.f32.mxu0 0.0
    %714 = vmatmul.mubr.f32.gmra.mxu0 %v597
    %v715 = vpop.f32.mrf.mxu0
    %v716 = vadd.f32 %v628, %v715
    %v717 = vpop.f32.mrf.mxu0
    %718 = vmatprep.mubr.f32.mxu0 0.0
    %719 = vmatmul.mubr.f32.gmra.mxu0 %v598
    %v720 = vpop.f32.mrf.mxu0
    %v721 = vadd.f32 %v628, %v720
    %v722 = vpop.f32.mrf.mxu0
    %723 = vmatprep.mubr.f32.mxu0 0.0
    %724 = vmatmul.mubr.f32.gmra.mxu0 %v599
    %v725 = vpop.f32.mrf.mxu0
    %v726 = vadd.f32 %v628, %v725
    %v727 = vpop.f32.mrf.mxu0
    %728 = vmatprep.mubr.f32.mxu0 0.0
    %729 = vmatmul.mubr.f32.gmra.mxu0 %v600
    %v730 = vpop.f32.mrf.mxu0
    %v731 = vadd.f32 %v628, %v730
    %v732 = vpop.f32.mrf.mxu0
    %733 = vmatprep.mubr.f32.mxu0 0.0
    %734 = vmatmul.mubr.f32.gmra.mxu0 %v601
    %v735 = vpop.f32.mrf.mxu0
    %v736 = vadd.f32 %v628, %v735
    %v737 = vpop.f32.mrf.mxu0
    %738 = vmatprep.mubr.f32.mxu0 0.0
    %739 = vmatmul.mubr.f32.gmra.mxu0 %v602
    %v740 = vpop.f32.mrf.mxu0
    %v741 = vadd.f32 %v628, %v740
    %v742 = vpop.f32.mrf.mxu0
    %743 = vmatprep.mubr.f32.mxu0 0.0
    %744 = vmatmul.mubr.f32.gmra.mxu0 %v603
    %v745 = vpop.f32.mrf.mxu0
    %v746 = vadd.f32 %v628, %v745
    %v747 = vpop.f32.mrf.mxu0
    %748 = vmatprep.mubr.f32.mxu0 0.0
    %749 = vmatmul.mubr.f32.gmra.mxu0 %v604
    %v750 = vpop.f32.mrf.mxu0
    %v751 = vadd.f32 %v628, %v750
    %v752 = vpop.f32.mrf.mxu0
    %753 = vmatprep.mubr.f32.mxu0 0.0
    %754 = vmatmul.mubr.f32.gmra.mxu0 %v605
    %v755 = vpop.f32.mrf.mxu0
    %v756 = vadd.f32 %v628, %v755
    %v757 = vpop.f32.mrf.mxu0
    %758 = vmatprep.mubr.f32.mxu0 0.0
    %759 = vmatmul.mubr.f32.gmra.mxu0 %v606
    %v760 = vpop.f32.mrf.mxu0
    %v761 = vadd.f32 %v628, %v760
    %v762 = vpop.f32.mrf.mxu0
    %763 = vmatprep.mubr.f32.mxu0 0.0
    %764 = vmatmul.mubr.f32.gmra.mxu0 %v607
    %v765 = vpop.f32.mrf.mxu0
    %v766 = vadd.f32 %v628, %v765
    %v767 = vpop.f32.mrf.mxu0
    %768 = vmatprep.mubr.f32.mxu0 0.0
    %769 = vmatmul.mubr.f32.gmra.mxu0 %v608
    %v770 = vpop.f32.mrf.mxu0
    %v771 = vadd.f32 %v628, %v770
    %v772 = vpop.f32.mrf.mxu0
    %773 = vdwg.mxu0
    %v774 = vmul.f32 %v696, 0.01
    %v775 = vmul.f32 %v701, 0.01
    %v776 = vmul.f32 %v706, 0.01
    %v777 = vmul.f32 %v711, 0.01
    %v778 = vmul.f32 %v716, 0.01
    %v779 = vmul.f32 %v721, 0.01
    %v780 = vmul.f32 %v726, 0.01
    %v781 = vmul.f32 %v731, 0.01
    %v782 = vmul.f32 %v736, 0.01
    %v783 = vmul.f32 %v741, 0.01
    %v784 = vmul.f32 %v746, 0.01
    %v785 = vmul.f32 %v751, 0.01
    %v786 = vmul.f32 %v756, 0.01
    %v787 = vmul.f32 %v761, 0.01
    %v788 = vmul.f32 %v766, 0.01
    %v789 = vmul.f32 %v771, 0.01
    %v790 = vmax.f32 %v696, %v774
    %v791 = vmax.f32 %v701, %v775
    %v792 = vmax.f32 %v706, %v776
    %v793 = vmax.f32 %v711, %v777
    %v794 = vmax.f32 %v716, %v778
    %v795 = vmax.f32 %v721, %v779
    %v796 = vmax.f32 %v726, %v780
    %v797 = vmax.f32 %v731, %v781
    %v798 = vmax.f32 %v736, %v782
    %v799 = vmax.f32 %v741, %v783
    %v800 = vmax.f32 %v746, %v784
    %v801 = vmax.f32 %v751, %v785
    %v802 = vmax.f32 %v756, %v786
    %v803 = vmax.f32 %v761, %v787
    %v804 = vmax.f32 %v766, %v788
    %v805 = vmax.f32 %v771, %v789
    %v806 = vld [vmem:[%s5] sm:$0xff]
    %v807 = vld [vmem:[%s6] sm:$0xff]
    %809 = vset.pattern.permute.xlu0 0
    %810 = vperm.xlu0 %809, %v807
    %v811 = vpop.permute.xlu0 %810
    %813 = vmatprep.subr.mxu0 0.0
    %814 = vmatpush1.xpose.msra.mxu0 %v805
    %815 = vmatprep.subr.mxu0 0.0
    %816 = vmatpush1.xpose.msra.mxu0 %v804
    %817 = vmatprep.subr.mxu0 0.0
    %818 = vmatpush1.xpose.msra.mxu0 %v803
    %819 = vmatprep.subr.mxu0 0.0
    %820 = vmatpush1.xpose.msra.mxu0 %v802
    %821 = vmatprep.subr.mxu0 0.0
    %822 = vmatpush1.xpose.msra.mxu0 %v801
    %823 = vmatprep.subr.mxu0 0.0
    %824 = vmatpush1.xpose.msra.mxu0 %v800
    %825 = vmatprep.subr.mxu0 0.0
    %826 = vmatpush1.xpose.msra.mxu0 %v799
    %827 = vmatprep.subr.mxu0 0.0
    %828 = vmatpush1.xpose.msra.mxu0 %v798
    %829 = vmatprep.subr.mxu0 0.0
    %830 = vmatpush1.xpose.msra.mxu0 %v797
    %831 = vmatprep.subr.mxu0 0.0
    %832 = vmatpush1.xpose.msra.mxu0 %v796
    %833 = vmatprep.subr.mxu0 0.0
    %834 = vmatpush1.xpose.msra.mxu0 %v795
    %835 = vmatprep.subr.mxu0 0.0
    %836 = vmatpush1.xpose.msra.mxu0 %v794
    %837 = vmatprep.subr.mxu0 0.0
    %838 = vmatpush1.xpose.msra.mxu0 %v793
    %839 = vmatprep.subr.mxu0 0.0
    %840 = vmatpush1.xpose.msra.mxu0 %v792
    %841 = vmatprep.subr.mxu0 0.0
    %842 = vmatpush1.xpose.msra.mxu0 %v791
    %843 = vmatprep.subr.mxu0 0.0
    %844 = vmatpush1.xpose.msra.mxu0 %v790
    %845 = vmatprep.subr.mxu0 0.0
    %846 = vmatpush2.xpose.msra.mxu0 0.0
    %847 = vmatprep.subr.mxu0 0.0
    %848 = vmatpush2.xpose.msra.mxu0 0.0
    %849 = vmatprep.subr.mxu0 0.0
    %850 = vmatpush2.xpose.msra.mxu0 0.0
    %851 = vmatprep.subr.mxu0 0.0
    %852 = vmatpush2.xpose.msra.mxu0 0.0
    %853 = vmatprep.subr.mxu0 0.0
    %854 = vmatpush2.xpose.msra.mxu0 0.0
    %855 = vmatprep.subr.mxu0 0.0
    %856 = vmatpush2.xpose.msra.mxu0 0.0
    %857 = vmatprep.subr.mxu0 0.0
    %858 = vmatpush2.xpose.msra.mxu0 0.0
    %859 = vmatprep.subr.mxu0 0.0
    %860 = vmatpush2.xpose.msra.mxu0 0.0
    %861 = vmatprep.subr.mxu0 0.0
    %862 = vmatpush2.xpose.msra.mxu0 0.0
    %863 = vmatprep.subr.mxu0 0.0
    %864 = vmatpush2.xpose.msra.mxu0 0.0
    %865 = vmatprep.subr.mxu0 0.0
    %866 = vmatpush2.xpose.msra.mxu0 0.0
    %867 = vmatprep.subr.mxu0 0.0
    %868 = vmatpush2.xpose.msra.mxu0 0.0
    %869 = vmatprep.subr.mxu0 0.0
    %870 = vmatpush2.xpose.msra.mxu0 0.0
    %871 = vmatprep.subr.mxu0 0.0
    %872 = vmatpush2.xpose.msra.mxu0 0.0
    %873 = vmatprep.subr.mxu0 0.0
    %874 = vmatpush2.xpose.msra.mxu0 0.0
    %875 = vmatprep.subr.mxu0 0.0
    %876 = vmatpush2.xpose.msra.mxu0 0.0
    %877 = vmatprep.mubr.f32.mxu0 0.0
    %878 = vmatmul.mubr.f32.gmra.mxu0 %v806
    %v879 = vpop.f32.mrf.mxu0
    %v880 = vadd.f32 %v811, %v879
    %v881 = vpop.f32.mrf.mxu0
    %882 = vdwg.mxu0
    %883 = vst [vmem:[#allocation5] sm:$0xff] %v880
    // Predicated region
    $region34: #{tpu_custom_call.1} parent=1 // pred_check
      _
    $region35: #{tpu_custom_call.1} parent=1 // pred_check_branch
      %885 = sbr.rel (0) target = $region37
    $region36: #{tpu_custom_call.1} parent=1 // pred_region
      %s887 = ssub.s32 128, 128
      %888 = vsyncadd [#allocation3], %s887
      %s890 = sshll.u32 [#allocation5], 4
      %s891 = int_to_ptr.vmem [resolvable:$true] %s890
      %893 = dma.vmem_to_hbm [thread:$0]  %s891, 128, %s7, [#allocation3]
    $region37: #{tpu_custom_call.1} parent=1 // pred_fallthru
      _
    // Predicated region
    $region38: #{tpu_custom_call.1} parent=1 // pred_check
      _
    $region39: #{tpu_custom_call.1} parent=1 // pred_check_branch
      %895 = sbr.rel (0) target = $region41
    $region40: #{tpu_custom_call.1} parent=1 // pred_region
      %896 = dma.done [#allocation3], 128
    $region41: #{tpu_custom_call.1} parent=1 // pred_fallthru
      _
    %897 = vsyncpa [#allocation3], 1
    %898 = vsyncpa [#allocation4], 1

</llo_original>
